<compile_context>
chip_gen: v7x
topology: tpu7x:2x2x1
jax: 0.10.0
libtpu: 0.0.40
codegen_flags: <defaults>
</compile_context>

<pallas_src>
import functools

import jax
import jax.numpy as jnp
from jax.experimental import pallas as pl
from jax.experimental.pallas import tpu as pltpu


_MAX_TB = 512  # max batch elements per grid step


# ----------------------------------------------------------------------------
# Per-generation tuning helpers
# ----------------------------------------------------------------------------
@functools.lru_cache(maxsize=None)
def _device_kind():
    try:
        return jax.devices()[0].device_kind.lower()
    except Exception:
        return ""


@functools.lru_cache(maxsize=None)
def _tc_per_device():
    """TensorCores visible to one Pallas call (megacore / v7x)."""
    kind = _device_kind()
    if "v7" in kind:
        return 2
    if "v5p" in kind or ("v4" in kind and "lite" not in kind):
        return 2
    return 1


@functools.lru_cache(maxsize=None)
def _vmem_budget():
    """(vmem_limit_bytes, per-pipelined-buffer byte budget) per TPU generation."""
    kind = _device_kind()
    if "v7" in kind:                      # 64 MiB physical VMEM per TC
        return 48 << 20, 6 << 20
    if "v6" in kind:                      # 128 MiB physical VMEM
        return 96 << 20, 12 << 20
    if "v5 lite" in kind or "v5e" in kind:
        return 64 << 20, 6 << 20          # lift the 16 MiB scoped default
    return 48 << 20, 6 << 20              # conservative default


@functools.lru_cache(maxsize=None)
def _cparams():
    limit, _ = _vmem_budget()
    return pltpu.CompilerParams(dimension_semantics=("parallel",),
                                vmem_limit_bytes=limit)


def _block_batch(B, n_max):
    """Batch block TB (divides the padded batch Bp) sized for the VMEM budget."""
    _, per_buf = _vmem_budget()
    budget = max(1, per_buf // max(1, 4 * n_max * n_max))
    tb = max(1, min(B, _MAX_TB, budget))
    nc = _tc_per_device()
    if nc > 1:
        tb = min(tb, -(-B // nc))          # >= nc grid steps so both TCs work
    if tb < B:
        tb = max(8, ((tb + 7) // 8) * 8)   # sublane-aligned 2-D blocks when tiling
        if tb >= B:
            tb = B
    Bp = -(-B // tb) * tb
    return tb, Bp


# ----------------------------------------------------------------------------
# Pallas kernels
# ----------------------------------------------------------------------------
def _bimap_kernel(x_ref, w_ref, o_ref):
    """Y_b = W^T X_b W for a block of TB symmetric matrices."""
    x = x_ref[...]                                    # (TB, n, n)
    w = w_ref[...]                                    # (n, m)
    tb, n, _ = x.shape
    m = w.shape[1]
    if n % 8 == 0 and m % 8 == 0:
        # Two tall MXU matmuls; the per-batch transpose goes to the XLU.
        p = jnp.dot(x.reshape(tb * n, n), w,
                    preferred_element_type=jnp.float32).reshape(tb, n, m)
        pt = jnp.swapaxes(p, 1, 2)                    # (TB, m, n) = (X W)^T
        y = jnp.dot(pt.reshape(tb * m, n), w,
                    preferred_element_type=jnp.float32).reshape(tb, m, m)
    else:
        # Fallback for non-8-multiple dims (no layout-collapsing reshapes).
        w3 = jnp.broadcast_to(w, (tb, n, m))
        p = jnp.einsum("bij,bjq->biq", x, w3,
                       preferred_element_type=jnp.float32)
        pt = jnp.swapaxes(p, 1, 2)
        y = jnp.einsum("bqi,bir->bqr", pt, w3,
                       preferred_element_type=jnp.float32)
    o_ref[...] = y                                    # == W^T X W (X symmetric)


def _reig_bimap_kernel(u_ref, lam_ref, w_ref, o_ref, *, eps):
    """Fused ReEig + next BiMap: Y = W^T U max(L,eps) U^T W = G D G^T, G=W^T U."""
    u = u_ref[...]                                    # (TB, n, n), eigvecs in columns
    d = jnp.maximum(lam_ref[...], eps)                # (TB, n), eps is a python float
    w = w_ref[...]                                    # (n, m)
    tb, n, _ = u.shape
    m = w.shape[1]
    ut = jnp.swapaxes(u, 1, 2)                        # (TB, n, n) = U^T
    if n % 8 == 0:
        gt = jnp.dot(ut.reshape(tb * n, n), w,        # tall (TB*n, n) @ (n, m)
                     preferred_element_type=jnp.float32).reshape(tb, n, m)
    else:
        gt = jnp.einsum("bki,biq->bkq", ut, jnp.broadcast_to(w, (tb, n, m)),
                        preferred_element_type=jnp.float32)
    g = jnp.swapaxes(gt, 1, 2)                        # (TB, m, n) = W^T U
    o_ref[...] = jnp.einsum("bpk,bqk->bpq", g * d[:, None, :], g,
                            preferred_element_type=jnp.float32)


def _eig_recon_kernel(u_ref, lam_ref, o_ref, *, fn):
    """U diag(fn(lam)) U^T per batch element."""
    u = u_ref[...]                                    # (TB, n, n)
    d = fn(lam_ref[...])                              # (TB, n)
    o_ref[...] = jnp.einsum("bik,bjk->bij", u * d[:, None, :], u,
                            preferred_element_type=jnp.float32)


def _linear_kernel(x_ref, w_ref, b_ref, o_ref):
    # out = X @ W_eff + b  (tril selection + sqrt(2) scaling folded into W_eff)
    o_ref[...] = (jnp.dot(x_ref[...], w_ref[...],
                          preferred_element_type=jnp.float32) + b_ref[...])


# ----------------------------------------------------------------------------
# Wrappers (batch is already a multiple of tb -- padded once in __call__)
# ----------------------------------------------------------------------------
def bimap(x, w, tb):
    B, n, _ = x.shape
    m = w.shape[1]
    return pl.pallas_call(
        _bimap_kernel,
        out_shape=jax.ShapeDtypeStruct((B, m, m), jnp.float32),
        grid=(B // tb,),
        in_specs=[pl.BlockSpec((tb, n, n), lambda b: (b, 0, 0)),
                  pl.BlockSpec((n, m), lambda b: (0, 0))],
        out_specs=pl.BlockSpec((tb, m, m), lambda b: (b, 0, 0)),
        compiler_params=_cparams(),
    )(x, w)


def reig_bimap(u, lam, w, eps, tb):
    B, n, _ = u.shape
    m = w.shape[1]
    kernel = functools.partial(_reig_bimap_kernel, eps=float(eps))
    return pl.pallas_call(
        kernel,
        out_shape=jax.ShapeDtypeStruct((B, m, m), jnp.float32),
        grid=(B // tb,),
        in_specs=[pl.BlockSpec((tb, n, n), lambda b: (b, 0, 0)),
                  pl.BlockSpec((tb, n), lambda b: (b, 0)),
                  pl.BlockSpec((n, m), lambda b: (0, 0))],
        out_specs=pl.BlockSpec((tb, m, m), lambda b: (b, 0, 0)),
        compiler_params=_cparams(),
    )(u, lam, w)


def eig_reconstruct(u, lam, fn, tb):
    B, n, _ = u.shape
    kernel = functools.partial(_eig_recon_kernel, fn=fn)
    return pl.pallas_call(
        kernel,
        out_shape=jax.ShapeDtypeStruct((B, n, n), jnp.float32),
        grid=(B // tb,),
        in_specs=[pl.BlockSpec((tb, n, n), lambda b: (b, 0, 0)),
                  pl.BlockSpec((tb, n), lambda b: (b, 0))],
        out_specs=pl.BlockSpec((tb, n, n), lambda b: (b, 0, 0)),
        compiler_params=_cparams(),
    )(u, lam)


def linear(x, w_eff, b, tb):
    B, F = x.shape
    O = w_eff.shape[1]
    return pl.pallas_call(
        _linear_kernel,
        out_shape=jax.ShapeDtypeStruct((B, O), jnp.float32),
        grid=(B // tb,),
        in_specs=[pl.BlockSpec((tb, F), lambda i: (i, 0)),
                  pl.BlockSpec((F, O), lambda i: (0, 0)),
                  pl.BlockSpec((1, O), lambda i: (0, 0))],
        out_specs=pl.BlockSpec((tb, O), lambda i: (i, 0)),
        compiler_params=_cparams(),
    )(x, w_eff, b.reshape(1, O))


# ----------------------------------------------------------------------------
# Model
# ----------------------------------------------------------------------------
class SPDNetKoblerPallas:
    """Pallas/JAX port of SPDNetKobler forward (batchnorm=False)."""

    def __init__(self, input_dim, hidden_layers_size, output_dim,
                 softmax=False, eps=1e-3, key=None):
        self.input_dim = input_dim
        self.hidden_layers_size = list(hidden_layers_size)
        self.output_dim = output_dim
        self.softmax = softmax
        self.eps = float(eps)

        if key is None:
            key = jax.random.PRNGKey(0)

        # BiMap weights: semi-orthogonal (Stiefel) matrices.
        dims = [input_dim] + self.hidden_layers_size
        self.bimap_weights = []
        for d_in, d_out in zip(dims[:-1], dims[1:]):
            key, sub = jax.random.split(key)
            a = jax.random.normal(sub, (d_in, d_in), dtype=jnp.float32)
            q, _ = jnp.linalg.qr(a)
            self.bimap_weights.append(q[:, :d_out])      # (d_in, d_out), W^T W = I

        # Final linear layer: feat = h(h+1)/2 -> output_dim.
        h = self.hidden_layers_size[-1]
        feat = h * (h + 1) // 2
        key, k_w, k_b = jax.random.split(key, 3)
        bound = 1.0 / float(feat) ** 0.5
        self.lin_w = jax.random.uniform(
            k_w, (feat, output_dim), minval=-bound, maxval=bound, dtype=jnp.float32)
        self.lin_b = jax.random.uniform(
            k_b, (output_dim,), minval=-bound, maxval=bound, dtype=jnp.float32)

        # Fold the tril-vectorization (diag entries, then lower off-diag entries
        # in row-major tril order scaled by sqrt(2)) into the linear weights:
        # out = vec(LogEig) @ W_eff + b, no runtime gather.
        rows, cols = jnp.tril_indices(h, k=-1)
        w_eff = jnp.zeros((h * h, output_dim), dtype=jnp.float32)
        diag_idx = jnp.arange(h) * h + jnp.arange(h)
        w_eff = w_eff.at[diag_idx].set(self.lin_w[:h])
        off_idx = rows * h + cols
        w_eff = w_eff.at[off_idx].set(jnp.sqrt(jnp.float32(2.0)) * self.lin_w[h:])
        self.lin_w_eff = w_eff

    def __call__(self, X):
        X = jnp.asarray(X, jnp.float32)
        B = X.shape[0]
        eps = self.eps
        W = self.bimap_weights
        L = len(W)

        # Single batch block / single pad for the whole forward pass.
        n_max = max([self.input_dim] + self.hidden_layers_size)
        tb, Bp = _block_batch(B, n_max)
        if Bp != B:
            pad = jnp.broadcast_to(
                jnp.eye(self.input_dim, dtype=jnp.float32),
                (Bp - B, self.input_dim, self.input_dim))
            X = jnp.concatenate([X, pad], axis=0)

        # First BiMap.
        X = bimap(X, W[0], tb)

        for i in range(L):
            # TODO(synk): batched symmetric eigendecomposition has no Pallas
            # primitive; eigh stays in XLA, everything else runs in Pallas.
            lam, u = jnp.linalg.eigh(X)
            if i + 1 < L:
                # Fused ReEig_i + BiMap_{i+1}.
                X = reig_bimap(u, lam, W[i + 1], eps, tb)
            else:
                # Fused ReEig_last + LogEig (no second eigh needed: same basis).
                X = eig_reconstruct(
                    u, lam, lambda l: jnp.log(jnp.maximum(l, eps)), tb)

        # Flatten (free row-major bitcast in XLA), then folded tril + Linear.
        h = self.hidden_layers_size[-1]
        flat = X.reshape(Bp, h * h)
        out = linear(flat, self.lin_w_eff, self.lin_b, tb)
        if self.softmax:
            out = jax.nn.softmax(out, axis=-1)
        return out[:B]


# ----------------------------------------------------------------------------
# Pure-JAX reference (mirrors the PyTorch module, f32)
# ----------------------------------------------------------------------------
def spdnet_reference(model, X):
    X = X.astype(jnp.float32)
    eps = model.eps
    Y = X
    for Wi in model.bimap_weights:
        Y = jnp.einsum("ip,bij,jq->bpq", Wi, Y, Wi)          # BiMap
        lam, u = jnp.linalg.eigh(Y)
        Y = jnp.einsum("bik,bk,bjk->bij", u, jnp.maximum(lam, eps), u)  # ReEig
    lam, u = jnp.linalg.eigh(Y)                               # LogEig
    Y = jnp.einsum("bik,bk,bjk->bij", u, jnp.log(lam), u)
    h = model.hidden_layers_size[-1]
    rows, cols = jnp.tril_indices(h, k=-1)
    idx = jnp.arange(h)
    feat = jnp.concatenate(
        [Y[:, idx, idx], jnp.sqrt(jnp.float32(2.0)) * Y[:, rows, cols]], axis=1)
    out = feat @ model.lin_w + model.lin_b
    if model.softmax:
        out = jax.nn.softmax(out, axis=-1)
    return out


# ----------------------------------------------------------------------------
# Demo
# ----------------------------------------------------------------------------
if __name__ == "__main__":
    batch = 2
    input_dim = 16
    hidden = [16, 8]
    output_dim = 4

    key = jax.random.PRNGKey(0)
    k_x, k_model = jax.random.split(key)

    # Deterministic SPD inputs: X = A A^T / n + I.
    A = jax.random.normal(k_x, (batch, input_dim, input_dim), dtype=jnp.float32)
    X = jnp.einsum("bij,bkj->bik", A, A) / input_dim \
        + jnp.eye(input_dim, dtype=jnp.float32)[None]

    model = SPDNetKoblerPallas(input_dim, hidden, output_dim,
                               softmax=False, eps=1e-3, key=k_model)
    out = jax.block_until_ready(model(X))

    assert out.shape == (batch, output_dim)
    assert bool(jnp.all(jnp.isfinite(out)))

    ref = jax.block_until_ready(spdnet_reference(model, X))
    max_err = float(jnp.max(jnp.abs(out - ref)))
    assert jnp.allclose(out, ref, atol=1e-2, rtol=1e-2), f"max abs err {max_err}"

    print("KERNEL_OK")
</pallas_src>

<mosaic_0001>
module attributes {stable_mosaic.version = 11 : i64} {
  func.func @_bimap_kernel(%arg0: i32, %arg1: memref<2x16x16xf32, #tpu.memory_space<vmem>>, %arg2: memref<16x16xf32, #tpu.memory_space<vmem>>, %arg3: memref<2x16x16xf32, #tpu.memory_space<vmem>>) attributes {dimension_semantics = [#tpu.dimension_semantics<parallel>], iteration_bounds = array<i64: 1>, scalar_prefetch = 0 : i64, scratch_operands = 0 : i64, tpu.core_type = #tpu.core_type<tc>, window_params = [{transform_indices = @transform_0, window_bounds = array<i64: 2, 16, 16>}, {pipeline_mode = #tpu.pipeline_mode<synchronous>, transform_indices = @transform_1, window_bounds = array<i64: 16, 16>}, {transform_indices = @transform_2, window_bounds = array<i64: 2, 16, 16>}]} {
    %c0 = arith.constant 0 : index
    %c0_0 = arith.constant 0 : index
    %c0_1 = arith.constant 0 : index
    %0 = vector.load %arg1[%c0, %c0_0, %c0_1] : memref<2x16x16xf32, #tpu.memory_space<vmem>>, vector<2x16x16xf32>
    %c0_2 = arith.constant 0 : index
    %c0_3 = arith.constant 0 : index
    %1 = vector.load %arg2[%c0_2, %c0_3] : memref<16x16xf32, #tpu.memory_space<vmem>>, vector<16x16xf32>
    %2 = vector.shape_cast %0 : vector<2x16x16xf32> to vector<32x16xf32>
    %cst = arith.constant dense<0.000000e+00> : vector<32x16xf32>
    %3 = tpu.matmul %2, %1, %cst {dimension_numbers = #tpu.dot_dimension_numbers<[1], [0], [0], [1], [0, 0, 1, 1], [], []>} : vector<32x16xf32>, vector<16x16xf32>, vector<32x16xf32> -> vector<32x16xf32>
    %4 = vector.shape_cast %3 : vector<32x16xf32> to vector<2x16x16xf32>
    %5 = tpu.transpose %4, [0, 2, 1] : vector<2x16x16xf32> -> vector<2x16x16xf32>
    %6 = vector.shape_cast %5 : vector<2x16x16xf32> to vector<32x16xf32>
    %cst_4 = arith.constant dense<0.000000e+00> : vector<32x16xf32>
    %7 = tpu.matmul %6, %1, %cst_4 {dimension_numbers = #tpu.dot_dimension_numbers<[1], [0], [0], [1], [0, 0, 1, 1], [], []>} : vector<32x16xf32>, vector<16x16xf32>, vector<32x16xf32> -> vector<32x16xf32>
    %8 = vector.shape_cast %7 : vector<32x16xf32> to vector<2x16x16xf32>
    %c0_5 = arith.constant 0 : index
    %c0_6 = arith.constant 0 : index
    %c0_7 = arith.constant 0 : index
    %9 = vector.load %arg3[%c0_5, %c0_6, %c0_7] : memref<2x16x16xf32, #tpu.memory_space<vmem>>, vector<2x16x16xf32>
    tpu.vector_store %arg3[%c0_5, %c0_6, %c0_7], %8 {strides = array<i32>} : memref<2x16x16xf32, #tpu.memory_space<vmem>>, vector<2x16x16xf32>,
    return
  }
  func.func @transform_0(%arg0: i32) -> (i32, i32, i32) {
    %c0_i32 = arith.constant 0 : i32
    %c0_i32_0 = arith.constant 0 : i32
    %c0_i32_1 = arith.constant 0 : i32
    return %arg0, %c0_i32, %c0_i32_0 : i32, i32, i32
  }
  func.func @transform_1(%arg0: i32) -> (i32, i32) {
    %c0_i32 = arith.constant 0 : i32
    %c0_i32_0 = arith.constant 0 : i32
    %c0_i32_1 = arith.constant 0 : i32
    return %c0_i32, %c0_i32_0 : i32, i32
  }
  func.func @transform_2(%arg0: i32) -> (i32, i32, i32) {
    %c0_i32 = arith.constant 0 : i32
    %c0_i32_0 = arith.constant 0 : i32
    %c0_i32_1 = arith.constant 0 : i32
    return %arg0, %c0_i32, %c0_i32_0 : i32, i32, i32
  }
}

</mosaic_0001>

<llo_original>
// kernel: tpu_custom_call.1
$region0: #{tpu_custom_call.1}
  #allocation0 [shape = 'u32[]', space=smem, size = 0x4, offset = 0x4, fixed_abs, tag = 'smem constant byte address 0x4 - core index']
  #allocation1 [shape = 'u32[144,128]{1,0:T(1,128)}', space=vmem, size = 0x12000, scoped, tag = 'internal scratch']
  %s0 = inlined_call_operand.hbm [shape: f32[2,16,16], index: 0, kind: input, shape index: {}]
  %s1 = inlined_call_operand.hbm [shape: f32[16,16], index: 1, kind: input, shape index: {}]
  %s2 = inlined_call_operand.hbm [shape: f32[2,16,16], index: 2, kind: output, shape index: {}]
  %s3 = sld [smem:[#allocation0]]
  $region26: #{tpu_custom_call.1} parent=0
    _
  %s5 = ssub.s32 1, %s3
  %s6 = scalar_select 0, %s5, %s3
  $region1: #{tpu_custom_call.1} parent=0
    #allocation2 [shape = 'u8[16384]{0}', space=vmem, size = 0x4000, scoped, tag = 'input window, operand 0, single buffered']
    #allocation3 [shape = 's32[1]{0}', space=sflag, size = 0x4, scoped, tag = 'scoped memory for tpu_custom_call.1']
    #allocation4 [shape = 's32[1]{0}', space=sflag, size = 0x4, scoped, tag = 'scoped memory for tpu_custom_call.1']
    #allocation5 [shape = 'u8[8192]{0}', space=vmem, size = 0x2000, scoped, tag = 'input window, operand 1, single buffered']
    #allocation6 [shape = 's32[1]{0}', space=sflag, size = 0x4, scoped, tag = 'scoped memory for tpu_custom_call.1']
    #allocation7 [shape = 'u8[16384]{0}', space=vmem, size = 0x4000, scoped, tag = 'output window, operand 0, single buffered']
    %7 = vsyncpa [#allocation3], 0
    %8 = vsyncpa [#allocation6], 0
    %9 = vsyncpa [#allocation4], 0
    // Predicated region
    $region2: #{tpu_custom_call.1} parent=1 // pred_check
      _
    $region3: #{tpu_custom_call.1} parent=1 // pred_check_branch
      %11 = sbr.rel (0) target = $region5
    $region4: #{tpu_custom_call.1} parent=1 // pred_region
      %s13 = ssub.s32 512, 512
      %14 = vsyncadd [#allocation3], %s13
      %s15 = sshll.u32 [#allocation2], 4
      %s16 = int_to_ptr.vmem [resolvable:$true] %s15
      %21 = dma.hbm_to_vmem [thread:$0]  %s0, 512, %s16, [#allocation3], 128, 128, 8
    $region5: #{tpu_custom_call.1} parent=1 // pred_fallthru
      _
    // Predicated region
    $region6: #{tpu_custom_call.1} parent=1 // pred_check
      _
    $region7: #{tpu_custom_call.1} parent=1 // pred_check_branch
      %23 = sbr.rel (0) target = $region9
    $region8: #{tpu_custom_call.1} parent=1 // pred_region
      %s25 = ssub.s32 256, 256
      %26 = vsyncadd [#allocation6], %s25
      %s27 = sshll.u32 [#allocation5], 4
      %s28 = int_to_ptr.vmem [resolvable:$true] %s27
      %33 = dma.hbm_to_vmem [thread:$0]  %s1, 256, %s28, [#allocation6], 128, 128, 8
    $region9: #{tpu_custom_call.1} parent=1 // pred_fallthru
      _
    // Predicated region
    $region10: #{tpu_custom_call.1} parent=1 // pred_check
      _
    $region11: #{tpu_custom_call.1} parent=1 // pred_check_branch
      %35 = sbr.rel (0) target = $region13
    $region12: #{tpu_custom_call.1} parent=1 // pred_region
      %36 = dma.done [#allocation3], 512
    $region13: #{tpu_custom_call.1} parent=1 // pred_fallthru
      _
    // Predicated region
    $region14: #{tpu_custom_call.1} parent=1 // pred_check
      _
    $region15: #{tpu_custom_call.1} parent=1 // pred_check_branch
      %38 = sbr.rel (0) target = $region17
    $region16: #{tpu_custom_call.1} parent=1 // pred_region
      %39 = dma.done [#allocation6], 256
    $region17: #{tpu_custom_call.1} parent=1 // pred_fallthru
      _
    %v40 = vld [vmem:[#allocation2] sm:$0xff]
    %v41 = vld [vmem:[#allocation2 + $0x8] sm:$0xff]
    %v42 = vld [vmem:[#allocation2 + $0x10] sm:$0xff]
    %v43 = vld [vmem:[#allocation2 + $0x18] sm:$0xff]
    %v44 = vld [vmem:[#allocation5] sm:$0xff]
    %v45 = vld [vmem:[#allocation5 + $0x8] sm:$0xff]
    %vm46 = vcmask 130048
    %v48 = vsel %vm46, %v40, 0
    %v51 = vsel %vm46, %v41, 0
    %v54 = vsel %vm46, %v42, 0
    %v57 = vsel %vm46, %v43, 0
    %59 = vmatprep.subr.mxu0 0.0
    %60 = vmatpush1.msra.mxu0 %v44
    %61 = vmatprep.subr.mxu0 0.0
    %62 = vmatpush1.msra.mxu0 %v45
    %63 = vmatprep.subr.mxu0 0.0
    %64 = vmatpush1.msra.mxu0 0.0
    %65 = vmatprep.subr.mxu0 0.0
    %66 = vmatpush1.msra.mxu0 0.0
    %67 = vmatprep.subr.mxu0 0.0
    %68 = vmatpush1.msra.mxu0 0.0
    %69 = vmatprep.subr.mxu0 0.0
    %70 = vmatpush1.msra.mxu0 0.0
    %71 = vmatprep.subr.mxu0 0.0
    %72 = vmatpush1.msra.mxu0 0.0
    %73 = vmatprep.subr.mxu0 0.0
    %74 = vmatpush1.msra.mxu0 0.0
    %75 = vmatprep.subr.mxu0 0.0
    %76 = vmatpush1.msra.mxu0 0.0
    %77 = vmatprep.subr.mxu0 0.0
    %78 = vmatpush1.msra.mxu0 0.0
    %79 = vmatprep.subr.mxu0 0.0
    %80 = vmatpush1.msra.mxu0 0.0
    %81 = vmatprep.subr.mxu0 0.0
    %82 = vmatpush1.msra.mxu0 0.0
    %83 = vmatprep.subr.mxu0 0.0
    %84 = vmatpush1.msra.mxu0 0.0
    %85 = vmatprep.subr.mxu0 0.0
    %86 = vmatpush1.msra.mxu0 0.0
    %87 = vmatprep.subr.mxu0 0.0
    %88 = vmatpush1.msra.mxu0 0.0
    %89 = vmatprep.subr.mxu0 0.0
    %90 = vmatpush1.msra.mxu0 0.0
    %91 = vmatprep.subr.mxu0 0.0
    %92 = vmatpush1.msra.mxu0 0.0
    %93 = vmatprep.subr.mxu0 0.0
    %94 = vmatpush1.msra.mxu0 0.0
    %95 = vmatprep.subr.mxu0 0.0
    %96 = vmatpush1.msra.mxu0 0.0
    %97 = vmatprep.subr.mxu0 0.0
    %98 = vmatpush1.msra.mxu0 0.0
    %99 = vmatprep.subr.mxu0 0.0
    %100 = vmatpush1.msra.mxu0 0.0
    %101 = vmatprep.subr.mxu0 0.0
    %102 = vmatpush1.msra.mxu0 0.0
    %103 = vmatprep.subr.mxu0 0.0
    %104 = vmatpush1.msra.mxu0 0.0
    %105 = vmatprep.subr.mxu0 0.0
    %106 = vmatpush1.msra.mxu0 0.0
    %107 = vmatprep.subr.mxu0 0.0
    %108 = vmatpush1.msra.mxu0 0.0
    %109 = vmatprep.subr.mxu0 0.0
    %110 = vmatpush1.msra.mxu0 0.0
    %111 = vmatprep.subr.mxu0 0.0
    %112 = vmatpush1.msra.mxu0 0.0
    %113 = vmatprep.subr.mxu0 0.0
    %114 = vmatpush1.msra.mxu0 0.0
    %115 = vmatprep.subr.mxu0 0.0
    %116 = vmatpush1.msra.mxu0 0.0
    %117 = vmatprep.subr.mxu0 0.0
    %118 = vmatpush1.msra.mxu0 0.0
    %119 = vmatprep.subr.mxu0 0.0
    %120 = vmatpush1.msra.mxu0 0.0
    %121 = vmatprep.subr.mxu0 0.0
    %122 = vmatpush1.msra.mxu0 0.0
    %123 = vmatprep.mubr.f32.mxu0 0.0
    %124 = vmatmul.mubr.f32.gmra.mrb[0].mxu0 %v48
    %v125 = vpop.f32.mrb[0].mxu0
    %v126 = vadd.f32 0.0, %v125
    %v127 = vpop.f32.mrb[0].mxu0
    %128 = vmatprep.mubr.f32.mxu0 0.0
    %129 = vmatmul.mubr.f32.gmra.mrb[0].mxu0 %v51
    %v130 = vpop.f32.mrb[0].mxu0
    %v131 = vadd.f32 0.0, %v130
    %v132 = vpop.f32.mrb[0].mxu0
    %133 = vmatprep.mubr.f32.mxu0 0.0
    %134 = vmatmul.mubr.f32.gmra.mrb[0].mxu0 %v54
    %v135 = vpop.f32.mrb[0].mxu0
    %v136 = vadd.f32 0.0, %v135
    %v137 = vpop.f32.mrb[0].mxu0
    %138 = vmatprep.mubr.f32.mxu0 0.0
    %139 = vmatmul.mubr.f32.gmra.mrb[0].mxu0 %v57
    %v140 = vpop.f32.mrb[0].mxu0
    %v141 = vadd.f32 0.0, %v140
    %v142 = vpop.f32.mrb[0].mxu0
    %143 = vdwg.mxu0
    %144 = vxpose.xlu0.b32.start [1/16] %v126, 128
    %145 = vxpose.xlu0.b32.cont [2/16] %v131, 128
    %146 = vxpose.xlu0.b32.cont [3/16] 0.0, 128
    %147 = vxpose.xlu0.b32.cont [4/16] 0.0, 128
    %148 = vxpose.xlu0.b32.cont [5/16] 0.0, 128
    %149 = vxpose.xlu0.b32.cont [6/16] 0.0, 128
    %150 = vxpose.xlu0.b32.cont [7/16] 0.0, 128
    %151 = vxpose.xlu0.b32.cont [8/16] 0.0, 128
    %152 = vxpose.xlu0.b32.cont [9/16] 0.0, 128
    %153 = vxpose.xlu0.b32.cont [10/16] 0.0, 128
    %154 = vxpose.xlu0.b32.cont [11/16] 0.0, 128
    %155 = vxpose.xlu0.b32.cont [12/16] 0.0, 128
    %156 = vxpose.xlu0.b32.cont [13/16] 0.0, 128
    %157 = vxpose.xlu0.b32.cont [14/16] 0.0, 128
    %158 = vxpose.xlu0.b32.cont [15/16] 0.0, 128
    %159 = vxpose.xlu0.b32.end [16/16] 0.0, 128
    %v160 = vpop.trf.xlu0
    %v161 = vpop.trf.xlu0
    %v162 = vpop.trf.xlu0
    %v163 = vpop.trf.xlu0
    %v164 = vpop.trf.xlu0
    %v165 = vpop.trf.xlu0
    %v166 = vpop.trf.xlu0
    %v167 = vpop.trf.xlu0
    %v168 = vpop.trf.xlu0
    %v169 = vpop.trf.xlu0
    %v170 = vpop.trf.xlu0
    %v171 = vpop.trf.xlu0
    %v172 = vpop.trf.xlu0
    %v173 = vpop.trf.xlu0
    %v174 = vpop.trf.xlu0
    %v175 = vpop.trf.xlu0
    %176 = vxpose.xlu0.b32.start [1/16] %v136, 128
    %177 = vxpose.xlu0.b32.cont [2/16] %v141, 128
    %178 = vxpose.xlu0.b32.cont [3/16] 0.0, 128
    %179 = vxpose.xlu0.b32.cont [4/16] 0.0, 128
    %180 = vxpose.xlu0.b32.cont [5/16] 0.0, 128
    %181 = vxpose.xlu0.b32.cont [6/16] 0.0, 128
    %182 = vxpose.xlu0.b32.cont [7/16] 0.0, 128
    %183 = vxpose.xlu0.b32.cont [8/16] 0.0, 128
    %184 = vxpose.xlu0.b32.cont [9/16] 0.0, 128
    %185 = vxpose.xlu0.b32.cont [10/16] 0.0, 128
    %186 = vxpose.xlu0.b32.cont [11/16] 0.0, 128
    %187 = vxpose.xlu0.b32.cont [12/16] 0.0, 128
    %188 = vxpose.xlu0.b32.cont [13/16] 0.0, 128
    %189 = vxpose.xlu0.b32.cont [14/16] 0.0, 128
    %190 = vxpose.xlu0.b32.cont [15/16] 0.0, 128
    %191 = vxpose.xlu0.b32.end [16/16] 0.0, 128
    %v192 = vpop.trf.xlu0
    %v193 = vpop.trf.xlu0
    %v194 = vpop.trf.xlu0
    %v195 = vpop.trf.xlu0
    %v196 = vpop.trf.xlu0
    %v197 = vpop.trf.xlu0
    %v198 = vpop.trf.xlu0
    %v199 = vpop.trf.xlu0
    %v200 = vpop.trf.xlu0
    %v201 = vpop.trf.xlu0
    %v202 = vpop.trf.xlu0
    %v203 = vpop.trf.xlu0
    %v204 = vpop.trf.xlu0
    %v205 = vpop.trf.xlu0
    %v206 = vpop.trf.xlu0
    %v207 = vpop.trf.xlu0
    %v209 = vsel %vm46, %v160, 0
    %v212 = vsel %vm46, %v161, 0
    %v215 = vsel %vm46, %v192, 0
    %v218 = vsel %vm46, %v193, 0
    %220 = vmatprep.subr.mxu0 0.0
    %221 = vmatpush1.msra.mxu0 %v44
    %222 = vmatprep.subr.mxu0 0.0
    %223 = vmatpush1.msra.mxu0 %v45
    %224 = vmatprep.subr.mxu0 0.0
    %225 = vmatpush1.msra.mxu0 0.0
    %226 = vmatprep.subr.mxu0 0.0
    %227 = vmatpush1.msra.mxu0 0.0
    %228 = vmatprep.subr.mxu0 0.0
    %229 = vmatpush1.msra.mxu0 0.0
    %230 = vmatprep.subr.mxu0 0.0
    %231 = vmatpush1.msra.mxu0 0.0
    %232 = vmatprep.subr.mxu0 0.0
    %233 = vmatpush1.msra.mxu0 0.0
    %234 = vmatprep.subr.mxu0 0.0
    %235 = vmatpush1.msra.mxu0 0.0
    %236 = vmatprep.subr.mxu0 0.0
    %237 = vmatpush1.msra.mxu0 0.0
    %238 = vmatprep.subr.mxu0 0.0
    %239 = vmatpush1.msra.mxu0 0.0
    %240 = vmatprep.subr.mxu0 0.0
    %241 = vmatpush1.msra.mxu0 0.0
    %242 = vmatprep.subr.mxu0 0.0
    %243 = vmatpush1.msra.mxu0 0.0
    %244 = vmatprep.subr.mxu0 0.0
    %245 = vmatpush1.msra.mxu0 0.0
    %246 = vmatprep.subr.mxu0 0.0
    %247 = vmatpush1.msra.mxu0 0.0
    %248 = vmatprep.subr.mxu0 0.0
    %249 = vmatpush1.msra.mxu0 0.0
    %250 = vmatprep.subr.mxu0 0.0
    %251 = vmatpush1.msra.mxu0 0.0
    %252 = vmatprep.subr.mxu0 0.0
    %253 = vmatpush1.msra.mxu0 0.0
    %254 = vmatprep.subr.mxu0 0.0
    %255 = vmatpush1.msra.mxu0 0.0
    %256 = vmatprep.subr.mxu0 0.0
    %257 = vmatpush1.msra.mxu0 0.0
    %258 = vmatprep.subr.mxu0 0.0
    %259 = vmatpush1.msra.mxu0 0.0
    %260 = vmatprep.subr.mxu0 0.0
    %261 = vmatpush1.msra.mxu0 0.0
    %262 = vmatprep.subr.mxu0 0.0
    %263 = vmatpush1.msra.mxu0 0.0
    %264 = vmatprep.subr.mxu0 0.0
    %265 = vmatpush1.msra.mxu0 0.0
    %266 = vmatprep.subr.mxu0 0.0
    %267 = vmatpush1.msra.mxu0 0.0
    %268 = vmatprep.subr.mxu0 0.0
    %269 = vmatpush1.msra.mxu0 0.0
    %270 = vmatprep.subr.mxu0 0.0
    %271 = vmatpush1.msra.mxu0 0.0
    %272 = vmatprep.subr.mxu0 0.0
    %273 = vmatpush1.msra.mxu0 0.0
    %274 = vmatprep.subr.mxu0 0.0
    %275 = vmatpush1.msra.mxu0 0.0
    %276 = vmatprep.subr.mxu0 0.0
    %277 = vmatpush1.msra.mxu0 0.0
    %278 = vmatprep.subr.mxu0 0.0
    %279 = vmatpush1.msra.mxu0 0.0
    %280 = vmatprep.subr.mxu0 0.0
    %281 = vmatpush1.msra.mxu0 0.0
    %282 = vmatprep.subr.mxu0 0.0
    %283 = vmatpush1.msra.mxu0 0.0
    %284 = vmatprep.mubr.f32.mxu0 0.0
    %285 = vmatmul.mubr.f32.gmra.mrb[0].mxu0 %v209
    %v286 = vpop.f32.mrb[0].mxu0
    %v287 = vadd.f32 0.0, %v286
    %v288 = vpop.f32.mrb[0].mxu0
    %289 = vmatprep.mubr.f32.mxu0 0.0
    %290 = vmatmul.mubr.f32.gmra.mrb[0].mxu0 %v212
    %v291 = vpop.f32.mrb[0].mxu0
    %v292 = vadd.f32 0.0, %v291
    %v293 = vpop.f32.mrb[0].mxu0
    %294 = vmatprep.mubr.f32.mxu0 0.0
    %295 = vmatmul.mubr.f32.gmra.mrb[0].mxu0 %v215
    %v296 = vpop.f32.mrb[0].mxu0
    %v297 = vadd.f32 0.0, %v296
    %v298 = vpop.f32.mrb[0].mxu0
    %299 = vmatprep.mubr.f32.mxu0 0.0
    %300 = vmatmul.mubr.f32.gmra.mrb[0].mxu0 %v218
    %v301 = vpop.f32.mrb[0].mxu0
    %v302 = vadd.f32 0.0, %v301
    %v303 = vpop.f32.mrb[0].mxu0
    %304 = vdwg.mxu0
    %305 = vst.msk [vmem:[#allocation7] sm:$0xff] %vm46, %v287
    %306 = vst.msk [vmem:[#allocation7 + $0x8] sm:$0xff] %vm46, %v292
    %307 = vst.msk [vmem:[#allocation7 + $0x10] sm:$0xff] %vm46, %v297
    %308 = vst.msk [vmem:[#allocation7 + $0x18] sm:$0xff] %vm46, %v302
    // Predicated region
    $region18: #{tpu_custom_call.1} parent=1 // pred_check
      _
    $region19: #{tpu_custom_call.1} parent=1 // pred_check_branch
      %310 = sbr.rel (0) target = $region21
    $region20: #{tpu_custom_call.1} parent=1 // pred_region
      %s312 = ssub.s32 512, 512
      %313 = vsyncadd [#allocation4], %s312
      %s314 = sshll.u32 [#allocation7], 4
      %s315 = int_to_ptr.vmem [resolvable:$true] %s314
      %320 = dma.vmem_to_hbm [thread:$0]  %s315, 512, %s2, [#allocation4], 128, 128, 8
    $region21: #{tpu_custom_call.1} parent=1 // pred_fallthru
      _
    // Predicated region
    $region22: #{tpu_custom_call.1} parent=1 // pred_check
      _
    $region23: #{tpu_custom_call.1} parent=1 // pred_check_branch
      %322 = sbr.rel (0) target = $region25
    $region24: #{tpu_custom_call.1} parent=1 // pred_region
      %323 = dma.done [#allocation4], 512
    $region25: #{tpu_custom_call.1} parent=1 // pred_fallthru
      _
    %324 = vsyncpa [#allocation3], 1
    %325 = vsyncpa [#allocation6], 1
    %326 = vsyncpa [#allocation4], 1

</llo_original>
